<compile_context>
chip_gen: v7x
topology: tpu7x:2x2x1
jax: 0.10.0
libtpu: 0.0.40
codegen_flags: <defaults>
</compile_context>

<pallas_src>
import jax
import jax.numpy as jnp
from jax.experimental import pallas as pl
from jax.experimental.pallas import tpu as pltpu

INPUT_DIM = 11      # typical snake-game state vector size
HIDDEN = 256
OUTPUT_DIM = 3

K_PAD = 128         # lane-padded input feature width (in-kernel pad)
N_PAD = 128         # lane-padded output width
BATCH_TILE = 1024   # multiple of 256; amortizes per-step overhead


def _round_up(x, m):
    return ((x + m - 1) // m) * m


def _cdiv(a, b):
    return (a + b - 1) // b


def dqn_kernel(x_ref, w0_ref, b0_ref, w1_ref, b1_ref,
               w2_ref, b2_ref, w3_ref, b3_ref, out_ref, xpad_ref):
    # x_ref: (tile, INPUT_DIM) bf16; weights bf16; biases f32;
    # out_ref: (tile, N_PAD) bf16; xpad_ref: (tile, K_PAD) bf16 VMEM scratch.
    #
    # Lane-pad the input tile to 128 inside VMEM so every matmul sees
    # 128-lane-dense operands.  Zero-fill + masked store each step: the fill is
    # a handful of vst's vs. 4 MXU passes, and (unlike a pl.when(step==0) init)
    # it stays correct when the grid is sharded across two TensorCores.
    xpad_ref[...] = jnp.zeros_like(xpad_ref)
    xpad_ref[:, :x_ref.shape[1]] = x_ref[...]
    x = xpad_ref[...]

    h = jnp.dot(x, w0_ref[...], preferred_element_type=jnp.float32) + b0_ref[...]
    h = jnp.maximum(h, 0.0).astype(jnp.bfloat16)

    h = jnp.dot(h, w1_ref[...], preferred_element_type=jnp.float32) + b1_ref[...]
    h = jnp.maximum(h, 0.0).astype(jnp.bfloat16)

    h = jnp.dot(h, w2_ref[...], preferred_element_type=jnp.float32) + b2_ref[...]
    h = jnp.maximum(h, 0.0).astype(jnp.bfloat16)

    o = jnp.dot(h, w3_ref[...], preferred_element_type=jnp.float32) + b3_ref[...]
    out_ref[...] = o.astype(out_ref.dtype)
    # TODO(synk): if the consumer is greedy action selection, fuse an argmax
    # over the OUTPUT_DIM lanes here and emit a (tile, 1) int32 block instead.


def prepare_params(params):
    """One-time weight prep (hoisted off the per-call hot path).

    params: [(W:(in,out) f32, b:(1,out) f32)] * 4  ->  (tensors, n_out)
    """
    (w0, b0), (w1, b1), (w2, b2), (w3, b3) = params
    d_in = w0.shape[0]
    n_out = w3.shape[1]

    w0p = jnp.zeros((K_PAD, w0.shape[1]), jnp.bfloat16).at[:d_in, :].set(
        w0.astype(jnp.bfloat16))
    w3p = jnp.zeros((w3.shape[0], N_PAD), jnp.bfloat16).at[:, :n_out].set(
        w3.astype(jnp.bfloat16))
    b3p = jnp.zeros((1, N_PAD), jnp.float32).at[:, :n_out].set(
        b3.astype(jnp.float32))

    tensors = (w0p, b0.astype(jnp.float32),
               w1.astype(jnp.bfloat16), b1.astype(jnp.float32),
               w2.astype(jnp.bfloat16), b2.astype(jnp.float32),
               w3p, b3p)
    return tensors, n_out


def dqn_forward(x, prepared):
    """x: (B, INPUT_DIM) f32.  prepared: output of prepare_params()."""
    tensors, n_out = prepared
    w0p, b0, w1b, b1, w2b, b2, w3p, b3p = tensors
    B, d_in = x.shape

    # --- batch tiling ------------------------------------------------------
    tile = min(BATCH_TILE, _round_up(B, 16))       # 16-row min (bf16 sublanes)
    n_tiles = _cdiv(B, tile)
    if B > 256 and n_tiles % 2 == 1:
        # v7x dual-TC: prefer an even grid so "parallel" sharding keeps both
        # TensorCores busy; pick the tile so padded work still ~= B.
        n_tiles += 1
        tile = min(tile, _round_up(_cdiv(B, n_tiles), 16))
        n_tiles = _cdiv(B, tile)
    b_pad = n_tiles * tile
    grid = (n_tiles,)

    # --- batch-pad only (no K-padded HBM round trip), cast to bf16 ----------
    xb = x.astype(jnp.bfloat16)
    if b_pad != B:
        xb = jnp.zeros((b_pad, d_in), jnp.bfloat16).at[:B, :].set(xb)

    # Full-array (grid-invariant) blocks for weights / biases.
    full = lambda arr: pl.BlockSpec(arr.shape, lambda i: (0,) * arr.ndim)
    # TODO(synk): pipeline_mode=pl.Buffered(1) on the invariant weight blocks
    # would drop the redundant second prefetch buffer (~0.25 MiB); skipped since
    # single-buffer support varies by version and VMEM is never the constraint.

    out = pl.pallas_call(
        dqn_kernel,
        out_shape=jax.ShapeDtypeStruct((b_pad, N_PAD), jnp.bfloat16),
        grid_spec=pltpu.PrefetchScalarGridSpec(
            num_scalar_prefetch=0,
            grid=grid,
            in_specs=[
                pl.BlockSpec((tile, d_in), lambda i: (i, 0)),
                full(w0p), full(b0),
                full(w1b), full(b1),
                full(w2b), full(b2),
                full(w3p), full(b3p),
            ],
            out_specs=pl.BlockSpec((tile, N_PAD), lambda i: (i, 0)),
            scratch_shapes=[pltpu.VMEM((tile, K_PAD), jnp.bfloat16)],
        ),
        compiler_params=pltpu.CompilerParams(
            dimension_semantics=("parallel",),
            vmem_limit_bytes=32 * 1024 * 1024),
    )(xb, w0p, b0, w1b, b1, w2b, b2, w3p, b3p)

    # Slice off batch/lane padding; cast back to f32 for the caller.  Under an
    # outer jit this fuses with the consumer, avoiding a second full-array pass.
    return out[:B, :n_out].astype(jnp.float32)


def init_params(key, input_dim=INPUT_DIM, output_dim=OUTPUT_DIM):
    """Deterministic synthetic init matching nn.Linear shapes, stored as (in, out)."""
    dims = [(input_dim, HIDDEN), (HIDDEN, HIDDEN), (HIDDEN, HIDDEN), (HIDDEN, output_dim)]
    params = []
    for (fan_in, fan_out) in dims:
        key, kw, kb = jax.random.split(key, 3)
        bound = 1.0 / jnp.sqrt(fan_in)  # PyTorch default uniform bound
        w = jax.random.uniform(kw, (fan_in, fan_out), jnp.float32, -bound, bound)
        b = jax.random.uniform(kb, (1, fan_out), jnp.float32, -bound, bound)
        params.append((w, b))
    return params


def dqn_reference(x, params):
    """Pure-JAX reference mirroring the kernel's precision (bf16 operands, f32 acc,
    final result rounded to bf16 like the kernel's output block)."""
    h = x.astype(jnp.bfloat16)
    for i, (w, b) in enumerate(params):
        h = jnp.dot(h.astype(jnp.bfloat16), w.astype(jnp.bfloat16),
                    preferred_element_type=jnp.float32) + b
        if i < len(params) - 1:
            h = jnp.maximum(h, 0.0)
    return h.astype(jnp.bfloat16).astype(jnp.float32)


if __name__ == "__main__":
    key = jax.random.PRNGKey(0)
    key, kx1, kx2 = jax.random.split(key, 3)
    params = init_params(key)
    prepared = prepare_params(params)   # one-time weight prep (off hot path)

    # Small inference-sized batch (single grid step, 16-row tile).
    x_small = jax.random.normal(kx1, (8, INPUT_DIM), jnp.float32)
    out_small = jax.block_until_ready(dqn_forward(x_small, prepared))
    ref_small = dqn_reference(x_small, params)
    assert out_small.shape == (8, OUTPUT_DIM)
    assert jnp.allclose(out_small, ref_small, atol=2e-2, rtol=2e-2), "mismatch (small batch)"

    # Non-multiple batch exercising padding + even multi-tile (grid=2) path.
    x_big = jax.random.normal(kx2, (300, INPUT_DIM), jnp.float32)
    out_big = jax.block_until_ready(dqn_forward(x_big, prepared))
    ref_big = dqn_reference(x_big, params)
    assert out_big.shape == (300, OUTPUT_DIM)
    assert jnp.allclose(out_big, ref_big, atol=2e-2, rtol=2e-2), "mismatch (large batch)"

    print("KERNEL_OK")
</pallas_src>

<mosaic_0001>
module attributes {stable_mosaic.version = 11 : i64} {
  func.func @dqn_kernel(%arg0: i32, %arg1: memref<16x11xbf16, #tpu.memory_space<vmem>>, %arg2: memref<128x256xbf16, #tpu.memory_space<vmem>>, %arg3: memref<1x256xf32, #tpu.memory_space<vmem>>, %arg4: memref<256x256xbf16, #tpu.memory_space<vmem>>, %arg5: memref<1x256xf32, #tpu.memory_space<vmem>>, %arg6: memref<256x256xbf16, #tpu.memory_space<vmem>>, %arg7: memref<1x256xf32, #tpu.memory_space<vmem>>, %arg8: memref<256x128xbf16, #tpu.memory_space<vmem>>, %arg9: memref<1x128xf32, #tpu.memory_space<vmem>>, %arg10: memref<16x128xbf16, #tpu.memory_space<vmem>>, %arg11: memref<16x128xbf16, #tpu.memory_space<vmem>>) attributes {dimension_semantics = [#tpu.dimension_semantics<parallel>], iteration_bounds = array<i64: 1>, scalar_prefetch = 0 : i64, scratch_operands = 1 : i64, tpu.core_type = #tpu.core_type<tc>, window_params = [{transform_indices = @transform_0, window_bounds = array<i64: 16, 11>}, {pipeline_mode = #tpu.pipeline_mode<synchronous>, transform_indices = @transform_1, window_bounds = array<i64: 128, 256>}, {pipeline_mode = #tpu.pipeline_mode<synchronous>, transform_indices = @transform_2, window_bounds = array<i64: 1, 256>}, {pipeline_mode = #tpu.pipeline_mode<synchronous>, transform_indices = @transform_3, window_bounds = array<i64: 256, 256>}, {pipeline_mode = #tpu.pipeline_mode<synchronous>, transform_indices = @transform_4, window_bounds = array<i64: 1, 256>}, {pipeline_mode = #tpu.pipeline_mode<synchronous>, transform_indices = @transform_5, window_bounds = array<i64: 256, 256>}, {pipeline_mode = #tpu.pipeline_mode<synchronous>, transform_indices = @transform_6, window_bounds = array<i64: 1, 256>}, {pipeline_mode = #tpu.pipeline_mode<synchronous>, transform_indices = @transform_7, window_bounds = array<i64: 256, 128>}, {pipeline_mode = #tpu.pipeline_mode<synchronous>, transform_indices = @transform_8, window_bounds = array<i64: 1, 128>}, {transform_indices = @transform_9, window_bounds = array<i64: 16, 128>}]} {
    %cst = arith.constant 0.000000e+00 : bf16
    %0 = vector.broadcast %cst : bf16 to vector<16x128xbf16>
    %c0 = arith.constant 0 : index
    %c0_0 = arith.constant 0 : index
    %1 = vector.load %arg11[%c0, %c0_0] : memref<16x128xbf16, #tpu.memory_space<vmem>>, vector<16x128xbf16>
    tpu.vector_store %arg11[%c0, %c0_0], %0 {strides = array<i32>} : memref<16x128xbf16, #tpu.memory_space<vmem>>, vector<16x128xbf16>,
    %c0_1 = arith.constant 0 : index
    %c0_2 = arith.constant 0 : index
    %2 = vector.load %arg1[%c0_1, %c0_2] : memref<16x11xbf16, #tpu.memory_space<vmem>>, vector<16x11xbf16>
    %c0_3 = arith.constant 0 : index
    %c0_4 = arith.constant 0 : index
    %3 = vector.load %arg11[%c0_3, %c0_4] : memref<16x128xbf16, #tpu.memory_space<vmem>>, vector<16x11xbf16>
    tpu.vector_store %arg11[%c0_3, %c0_4], %2 {strides = array<i32>} : memref<16x128xbf16, #tpu.memory_space<vmem>>, vector<16x11xbf16>,
    %c0_5 = arith.constant 0 : index
    %c0_6 = arith.constant 0 : index
    %4 = vector.load %arg11[%c0_5, %c0_6] : memref<16x128xbf16, #tpu.memory_space<vmem>>, vector<16x128xbf16>
    %c0_7 = arith.constant 0 : index
    %c0_8 = arith.constant 0 : index
    %5 = vector.load %arg2[%c0_7, %c0_8] : memref<128x256xbf16, #tpu.memory_space<vmem>>, vector<128x256xbf16>
    %cst_9 = arith.constant dense<0.000000e+00> : vector<16x256xf32>
    %6 = tpu.matmul %4, %5, %cst_9 {dimension_numbers = #tpu.dot_dimension_numbers<[1], [0], [0], [1], [0, 0, 1, 1], [], []>} : vector<16x128xbf16>, vector<128x256xbf16>, vector<16x256xf32> -> vector<16x256xf32>
    %c0_10 = arith.constant 0 : index
    %c0_11 = arith.constant 0 : index
    %7 = vector.load %arg3[%c0_10, %c0_11] : memref<1x256xf32, #tpu.memory_space<vmem>>, vector<1x256xf32>
    %8 = vector.broadcast %7 : vector<1x256xf32> to vector<16x256xf32>
    %9 = arith.addf %6, %8 : vector<16x256xf32>
    %cst_12 = arith.constant 0.000000e+00 : f32
    %10 = vector.broadcast %cst_12 : f32 to vector<16x256xf32>
    %11 = arith.maximumf %9, %10 : vector<16x256xf32>
    %12 = arith.truncf %11 : vector<16x256xf32> to vector<16x256xbf16>
    %c0_13 = arith.constant 0 : index
    %c0_14 = arith.constant 0 : index
    %13 = vector.load %arg4[%c0_13, %c0_14] : memref<256x256xbf16, #tpu.memory_space<vmem>>, vector<256x256xbf16>
    %cst_15 = arith.constant dense<0.000000e+00> : vector<16x256xf32>
    %14 = tpu.matmul %12, %13, %cst_15 {dimension_numbers = #tpu.dot_dimension_numbers<[1], [0], [0], [1], [0, 0, 1, 1], [], []>} : vector<16x256xbf16>, vector<256x256xbf16>, vector<16x256xf32> -> vector<16x256xf32>
    %c0_16 = arith.constant 0 : index
    %c0_17 = arith.constant 0 : index
    %15 = vector.load %arg5[%c0_16, %c0_17] : memref<1x256xf32, #tpu.memory_space<vmem>>, vector<1x256xf32>
    %16 = vector.broadcast %15 : vector<1x256xf32> to vector<16x256xf32>
    %17 = arith.addf %14, %16 : vector<16x256xf32>
    %cst_18 = arith.constant 0.000000e+00 : f32
    %18 = vector.broadcast %cst_18 : f32 to vector<16x256xf32>
    %19 = arith.maximumf %17, %18 : vector<16x256xf32>
    %20 = arith.truncf %19 : vector<16x256xf32> to vector<16x256xbf16>
    %c0_19 = arith.constant 0 : index
    %c0_20 = arith.constant 0 : index
    %21 = vector.load %arg6[%c0_19, %c0_20] : memref<256x256xbf16, #tpu.memory_space<vmem>>, vector<256x256xbf16>
    %cst_21 = arith.constant dense<0.000000e+00> : vector<16x256xf32>
    %22 = tpu.matmul %20, %21, %cst_21 {dimension_numbers = #tpu.dot_dimension_numbers<[1], [0], [0], [1], [0, 0, 1, 1], [], []>} : vector<16x256xbf16>, vector<256x256xbf16>, vector<16x256xf32> -> vector<16x256xf32>
    %c0_22 = arith.constant 0 : index
    %c0_23 = arith.constant 0 : index
    %23 = vector.load %arg7[%c0_22, %c0_23] : memref<1x256xf32, #tpu.memory_space<vmem>>, vector<1x256xf32>
    %24 = vector.broadcast %23 : vector<1x256xf32> to vector<16x256xf32>
    %25 = arith.addf %22, %24 : vector<16x256xf32>
    %cst_24 = arith.constant 0.000000e+00 : f32
    %26 = vector.broadcast %cst_24 : f32 to vector<16x256xf32>
    %27 = arith.maximumf %25, %26 : vector<16x256xf32>
    %28 = arith.truncf %27 : vector<16x256xf32> to vector<16x256xbf16>
    %c0_25 = arith.constant 0 : index
    %c0_26 = arith.constant 0 : index
    %29 = vector.load %arg8[%c0_25, %c0_26] : memref<256x128xbf16, #tpu.memory_space<vmem>>, vector<256x128xbf16>
    %cst_27 = arith.constant dense<0.000000e+00> : vector<16x128xf32>
    %30 = tpu.matmul %28, %29, %cst_27 {dimension_numbers = #tpu.dot_dimension_numbers<[1], [0], [0], [1], [0, 0, 1, 1], [], []>} : vector<16x256xbf16>, vector<256x128xbf16>, vector<16x128xf32> -> vector<16x128xf32>
    %c0_28 = arith.constant 0 : index
    %c0_29 = arith.constant 0 : index
    %31 = vector.load %arg9[%c0_28, %c0_29] : memref<1x128xf32, #tpu.memory_space<vmem>>, vector<1x128xf32>
    %32 = vector.broadcast %31 : vector<1x128xf32> to vector<16x128xf32>
    %33 = arith.addf %30, %32 : vector<16x128xf32>
    %34 = arith.truncf %33 : vector<16x128xf32> to vector<16x128xbf16>
    %c0_30 = arith.constant 0 : index
    %c0_31 = arith.constant 0 : index
    %35 = vector.load %arg10[%c0_30, %c0_31] : memref<16x128xbf16, #tpu.memory_space<vmem>>, vector<16x128xbf16>
    tpu.vector_store %arg10[%c0_30, %c0_31], %34 {strides = array<i32>} : memref<16x128xbf16, #tpu.memory_space<vmem>>, vector<16x128xbf16>,
    return
  }
  func.func @transform_0(%arg0: i32) -> (i32, i32) {
    %c0_i32 = arith.constant 0 : i32
    %c0_i32_0 = arith.constant 0 : i32
    return %arg0, %c0_i32 : i32, i32
  }
  func.func @transform_1(%arg0: i32) -> (i32, i32) {
    %c0_i32 = arith.constant 0 : i32
    %c0_i32_0 = arith.constant 0 : i32
    %c0_i32_1 = arith.constant 0 : i32
    return %c0_i32, %c0_i32_0 : i32, i32
  }
  func.func @transform_2(%arg0: i32) -> (i32, i32) {
    %c0_i32 = arith.constant 0 : i32
    %c0_i32_0 = arith.constant 0 : i32
    %c0_i32_1 = arith.constant 0 : i32
    return %c0_i32, %c0_i32_0 : i32, i32
  }
  func.func @transform_3(%arg0: i32) -> (i32, i32) {
    %c0_i32 = arith.constant 0 : i32
    %c0_i32_0 = arith.constant 0 : i32
    %c0_i32_1 = arith.constant 0 : i32
    return %c0_i32, %c0_i32_0 : i32, i32
  }
  func.func @transform_4(%arg0: i32) -> (i32, i32) {
    %c0_i32 = arith.constant 0 : i32
    %c0_i32_0 = arith.constant 0 : i32
    %c0_i32_1 = arith.constant 0 : i32
    return %c0_i32, %c0_i32_0 : i32, i32
  }
  func.func @transform_5(%arg0: i32) -> (i32, i32) {
    %c0_i32 = arith.constant 0 : i32
    %c0_i32_0 = arith.constant 0 : i32
    %c0_i32_1 = arith.constant 0 : i32
    return %c0_i32, %c0_i32_0 : i32, i32
  }
  func.func @transform_6(%arg0: i32) -> (i32, i32) {
    %c0_i32 = arith.constant 0 : i32
    %c0_i32_0 = arith.constant 0 : i32
    %c0_i32_1 = arith.constant 0 : i32
    return %c0_i32, %c0_i32_0 : i32, i32
  }
  func.func @transform_7(%arg0: i32) -> (i32, i32) {
    %c0_i32 = arith.constant 0 : i32
    %c0_i32_0 = arith.constant 0 : i32
    %c0_i32_1 = arith.constant 0 : i32
    return %c0_i32, %c0_i32_0 : i32, i32
  }
  func.func @transform_8(%arg0: i32) -> (i32, i32) {
    %c0_i32 = arith.constant 0 : i32
    %c0_i32_0 = arith.constant 0 : i32
    %c0_i32_1 = arith.constant 0 : i32
    return %c0_i32, %c0_i32_0 : i32, i32
  }
  func.func @transform_9(%arg0: i32) -> (i32, i32) {
    %c0_i32 = arith.constant 0 : i32
    %c0_i32_0 = arith.constant 0 : i32
    return %arg0, %c0_i32 : i32, i32
  }
}

</mosaic_0001>

<llo_original>
// kernel: tpu_custom_call.1
$region0: #{tpu_custom_call.1}
  #allocation0 [shape = 'u32[]', space=smem, size = 0x4, offset = 0x4, fixed_abs, tag = 'smem constant byte address 0x4 - core index']
  #allocation1 [shape = 'u32[144,128]{1,0:T(1,128)}', space=vmem, size = 0x12000, scoped, tag = 'internal scratch']
  #allocation2 [shape = 'bf16[16,128]{1,0:T(16,128)(2,1)}', space=vmem, size = 0x1000, scoped, tag = 'scratch operand']
  %s0 = inlined_call_operand.hbm [shape: bf16[16,11], index: 0, kind: input, shape index: {}]
  %s1 = inlined_call_operand.hbm [shape: bf16[128,256], index: 1, kind: input, shape index: {}]
  %s2 = inlined_call_operand.vmem [shape: f32[1,256], index: 2, kind: input, shape index: {}]
  %s3 = inlined_call_operand.hbm [shape: bf16[256,256], index: 3, kind: input, shape index: {}]
  %s4 = inlined_call_operand.vmem [shape: f32[1,256], index: 4, kind: input, shape index: {}]
  %s5 = inlined_call_operand.hbm [shape: bf16[256,256], index: 5, kind: input, shape index: {}]
  %s6 = inlined_call_operand.vmem [shape: f32[1,256], index: 6, kind: input, shape index: {}]
  %s7 = inlined_call_operand.hbm [shape: bf16[256,128], index: 7, kind: input, shape index: {}]
  %s8 = inlined_call_operand.vmem [shape: f32[1,128], index: 8, kind: input, shape index: {}]
  %s9 = inlined_call_operand.hbm [shape: bf16[16,128], index: 9, kind: output, shape index: {}]
  %s10 = sld [smem:[#allocation0]]
  $region66: #{tpu_custom_call.1} parent=0
    _
  %s12 = ssub.s32 1, %s10
  %s13 = scalar_select 0, %s12, %s10
  $region1: #{tpu_custom_call.1} parent=0
    #allocation3 [shape = 'u8[4096]{0}', space=vmem, size = 0x1000, scoped, tag = 'input window, operand 0, single buffered']
    #allocation4 [shape = 's32[1]{0}', space=sflag, size = 0x4, scoped, tag = 'scoped memory for tpu_custom_call.1']
    #allocation5 [shape = 's32[1]{0}', space=sflag, size = 0x4, scoped, tag = 'scoped memory for tpu_custom_call.1']
    #allocation6 [shape = 'u8[65536]{0}', space=vmem, size = 0x10000, scoped, tag = 'input window, operand 1, single buffered']
    #allocation7 [shape = 's32[1]{0}', space=sflag, size = 0x4, scoped, tag = 'scoped memory for tpu_custom_call.1']
    #allocation8 [shape = 'u8[131072]{0}', space=vmem, size = 0x20000, scoped, tag = 'input window, operand 3, single buffered']
    #allocation9 [shape = 'u8[131072]{0}', space=vmem, size = 0x20000, scoped, tag = 'input window, operand 5, single buffered']
    #allocation10 [shape = 's32[1]{0}', space=sflag, size = 0x4, scoped, tag = 'scoped memory for tpu_custom_call.1']
    #allocation11 [shape = 'u8[65536]{0}', space=vmem, size = 0x10000, scoped, tag = 'input window, operand 7, single buffered']
    #allocation12 [shape = 'u8[4096]{0}', space=vmem, size = 0x1000, scoped, tag = 'output window, operand 0, single buffered']
    %14 = vsyncpa [#allocation4], 0
    %15 = vsyncpa [#allocation7], 0
    %16 = vsyncpa [#allocation10], 0
    %17 = vsyncpa [#allocation5], 0
    // Predicated region
    $region2: #{tpu_custom_call.1} parent=1 // pred_check
      _
    $region3: #{tpu_custom_call.1} parent=1 // pred_check_branch
      %19 = sbr.rel (0) target = $region5
    $region4: #{tpu_custom_call.1} parent=1 // pred_region
      %s21 = ssub.s32 128, 128
      %22 = vsyncadd [#allocation4], %s21
      %s23 = sshll.u32 [#allocation3], 4
      %s24 = int_to_ptr.vmem [resolvable:$true] %s23
      %29 = dma.hbm_to_vmem [thread:$0]  %s0, 128, %s24, [#allocation4], 64, 64, 4
    $region5: #{tpu_custom_call.1} parent=1 // pred_fallthru
      _
    // Predicated region
    $region6: #{tpu_custom_call.1} parent=1 // pred_check
      _
    $region7: #{tpu_custom_call.1} parent=1 // pred_check_branch
      %31 = sbr.rel (0) target = $region9
    $region8: #{tpu_custom_call.1} parent=1 // pred_region
      %s33 = ssub.s32 2048, 2048
      %34 = vsyncadd [#allocation7], %s33
      %s35 = sshll.u32 [#allocation6], 4
      %s36 = int_to_ptr.vmem [resolvable:$true] %s35
      %41 = dma.hbm_to_vmem [thread:$0]  %s1, 2048, %s36, [#allocation7], 128, 128, 8
    $region9: #{tpu_custom_call.1} parent=1 // pred_fallthru
      _
    // Predicated region
    $region10: #{tpu_custom_call.1} parent=1 // pred_check
      _
    $region11: #{tpu_custom_call.1} parent=1 // pred_check_branch
      %43 = sbr.rel (0) target = $region13
    $region12: #{tpu_custom_call.1} parent=1 // pred_region
      _
    $region13: #{tpu_custom_call.1} parent=1 // pred_fallthru
      _
    // Predicated region
    $region14: #{tpu_custom_call.1} parent=1 // pred_check
      _
    $region15: #{tpu_custom_call.1} parent=1 // pred_check_branch
      %45 = sbr.rel (0) target = $region17
    $region16: #{tpu_custom_call.1} parent=1 // pred_region
      %s47 = ssub.s32 4096, 4096
      %48 = vsyncadd [#allocation7], %s47
      %s49 = sshll.u32 [#allocation8], 4
      %s50 = int_to_ptr.vmem [resolvable:$true] %s49
      %55 = dma.hbm_to_vmem [thread:$0]  %s3, 4096, %s50, [#allocation7], 128, 128, 8
    $region17: #{tpu_custom_call.1} parent=1 // pred_fallthru
      _
    // Predicated region
    $region18: #{tpu_custom_call.1} parent=1 // pred_check
      _
    $region19: #{tpu_custom_call.1} parent=1 // pred_check_branch
      %57 = sbr.rel (0) target = $region21
    $region20: #{tpu_custom_call.1} parent=1 // pred_region
      _
    $region21: #{tpu_custom_call.1} parent=1 // pred_fallthru
      _
    // Predicated region
    $region22: #{tpu_custom_call.1} parent=1 // pred_check
      _
    $region23: #{tpu_custom_call.1} parent=1 // pred_check_branch
      %59 = sbr.rel (0) target = $region25
    $region24: #{tpu_custom_call.1} parent=1 // pred_region
      %s61 = ssub.s32 4096, 4096
      %62 = vsyncadd [#allocation10], %s61
      %s63 = sshll.u32 [#allocation9], 4
      %s64 = int_to_ptr.vmem [resolvable:$true] %s63
      %69 = dma.hbm_to_vmem [thread:$0]  %s5, 4096, %s64, [#allocation10], 128, 128, 8
    $region25: #{tpu_custom_call.1} parent=1 // pred_fallthru
      _
    // Predicated region
    $region26: #{tpu_custom_call.1} parent=1 // pred_check
      _
    $region27: #{tpu_custom_call.1} parent=1 // pred_check_branch
      %71 = sbr.rel (0) target = $region29
    $region28: #{tpu_custom_call.1} parent=1 // pred_region
      _
    $region29: #{tpu_custom_call.1} parent=1 // pred_fallthru
      _
    // Predicated region
    $region30: #{tpu_custom_call.1} parent=1 // pred_check
      _
    $region31: #{tpu_custom_call.1} parent=1 // pred_check_branch
      %73 = sbr.rel (0) target = $region33
    $region32: #{tpu_custom_call.1} parent=1 // pred_region
      %s75 = ssub.s32 2048, 2048
      %76 = vsyncadd [#allocation10], %s75
      %s77 = sshll.u32 [#allocation11], 4
      %s78 = int_to_ptr.vmem [resolvable:$true] %s77
      %83 = dma.hbm_to_vmem [thread:$0]  %s7, 2048, %s78, [#allocation10], 64, 64, 4
    $region33: #{tpu_custom_call.1} parent=1 // pred_fallthru
      _
    // Predicated region
    $region34: #{tpu_custom_call.1} parent=1 // pred_check
      _
    $region35: #{tpu_custom_call.1} parent=1 // pred_check_branch
      %85 = sbr.rel (0) target = $region37
    $region36: #{tpu_custom_call.1} parent=1 // pred_region
      _
    $region37: #{tpu_custom_call.1} parent=1 // pred_fallthru
      _
    // Predicated region
    $region38: #{tpu_custom_call.1} parent=1 // pred_check
      _
    $region39: #{tpu_custom_call.1} parent=1 // pred_check_branch
      %87 = sbr.rel (0) target = $region41
    $region40: #{tpu_custom_call.1} parent=1 // pred_region
      %88 = dma.done [#allocation4], 128
    $region41: #{tpu_custom_call.1} parent=1 // pred_fallthru
      _
    // Predicated region
    $region42: #{tpu_custom_call.1} parent=1 // pred_check
      _
    $region43: #{tpu_custom_call.1} parent=1 // pred_check_branch
      %90 = sbr.rel (0) target = $region45
    $region44: #{tpu_custom_call.1} parent=1 // pred_region
      %91 = dma.done [#allocation7], 2048
    $region45: #{tpu_custom_call.1} parent=1 // pred_fallthru
      _
    // Predicated region
    $region46: #{tpu_custom_call.1} parent=1 // pred_check
      _
    $region47: #{tpu_custom_call.1} parent=1 // pred_check_branch
      %93 = sbr.rel (0) target = $region49
    $region48: #{tpu_custom_call.1} parent=1 // pred_region
      %94 = dma.done [#allocation7], 4096
    $region49: #{tpu_custom_call.1} parent=1 // pred_fallthru
      _
    // Predicated region
    $region50: #{tpu_custom_call.1} parent=1 // pred_check
      _
    $region51: #{tpu_custom_call.1} parent=1 // pred_check_branch
      %96 = sbr.rel (0) target = $region53
    $region52: #{tpu_custom_call.1} parent=1 // pred_region
      %97 = dma.done [#allocation10], 4096
    $region53: #{tpu_custom_call.1} parent=1 // pred_fallthru
      _
    // Predicated region
    $region54: #{tpu_custom_call.1} parent=1 // pred_check
      _
    $region55: #{tpu_custom_call.1} parent=1 // pred_check_branch
      %99 = sbr.rel (0) target = $region57
    $region56: #{tpu_custom_call.1} parent=1 // pred_region
      %100 = dma.done [#allocation10], 2048
    $region57: #{tpu_custom_call.1} parent=1 // pred_fallthru
      _
    %102 = vst [vmem:[#allocation2] sm:$0xff] 0
    %v103 = vld [vmem:[#allocation3] sm:$0xf]
    %v104 = vld [vmem:[#allocation3 + $0x4] sm:$0xf]
    %v107 = vunpack.c.l.b16 %v103
    %v108 = vunpack.c.l.b16 %v104
    %v109 = vpack.c.b16 %v108, %v107
    %vm111 = vcmask 89088
    %112 = vst.msk [vmem:[#allocation2] sm:$0xff] %vm111, %v109
    %v113 = vld [vmem:[#allocation2] sm:$0xff]
    %v114 = vld [vmem:[#allocation6] sm:$0xff]
    %v115 = vld [vmem:[#allocation6 + $0x8] sm:$0xff]
    %v116 = vld [vmem:[#allocation6 + $0x10] sm:$0xff]
    %v117 = vld [vmem:[#allocation6 + $0x18] sm:$0xff]
    %v118 = vld [vmem:[#allocation6 + $0x20] sm:$0xff]
    %v119 = vld [vmem:[#allocation6 + $0x28] sm:$0xff]
    %v120 = vld [vmem:[#allocation6 + $0x30] sm:$0xff]
    %v121 = vld [vmem:[#allocation6 + $0x38] sm:$0xff]
    %v122 = vld [vmem:[#allocation6 + $0x40] sm:$0xff]
    %v123 = vld [vmem:[#allocation6 + $0x48] sm:$0xff]
    %v124 = vld [vmem:[#allocation6 + $0x50] sm:$0xff]
    %v125 = vld [vmem:[#allocation6 + $0x58] sm:$0xff]
    %v126 = vld [vmem:[#allocation6 + $0x60] sm:$0xff]
    %v127 = vld [vmem:[#allocation6 + $0x68] sm:$0xff]
    %v128 = vld [vmem:[#allocation6 + $0x70] sm:$0xff]
    %v129 = vld [vmem:[#allocation6 + $0x78] sm:$0xff]
    %v130 = vld [vmem:[%s2] sm:$0x3]
    %v132 = vlaneseq
    %v133 = vshrl.u32 %v132, 7
    %v134 = vsub.s32 0, %v133
    %v135 = vrot.slane %v130, %v134
    %v136 = vlaneseq
    %v137 = vshrl.u32 %v136, 7
    %v138 = vsub.s32 1, %v137
    %v139 = vrot.slane %v130, %v138
    %v158 = vunpack.c.l.b16 %v114
    %v159 = vunpack.c.h.b16 %v114
    %v160 = vunpack.c.l.b16 %v115
    %v161 = vunpack.c.h.b16 %v115
    %v162 = vunpack.c.l.b16 %v116
    %v163 = vunpack.c.h.b16 %v116
    %v164 = vunpack.c.l.b16 %v117
    %v165 = vunpack.c.h.b16 %v117
    %v166 = vunpack.c.l.b16 %v118
    %v167 = vunpack.c.h.b16 %v118
    %v168 = vunpack.c.l.b16 %v119
    %v169 = vunpack.c.h.b16 %v119
    %v170 = vunpack.c.l.b16 %v120
    %v171 = vunpack.c.h.b16 %v120
    %v172 = vunpack.c.l.b16 %v121
    %v173 = vunpack.c.h.b16 %v121
    %v174 = vunpack.c.l.b16 %v122
    %v175 = vunpack.c.h.b16 %v122
    %v176 = vunpack.c.l.b16 %v123
    %v177 = vunpack.c.h.b16 %v123
    %v178 = vunpack.c.l.b16 %v124
    %v179 = vunpack.c.h.b16 %v124
    %v180 = vunpack.c.l.b16 %v125
    %v181 = vunpack.c.h.b16 %v125
    %v182 = vunpack.c.l.b16 %v126
    %v183 = vunpack.c.h.b16 %v126
    %v184 = vunpack.c.l.b16 %v127
    %v185 = vunpack.c.h.b16 %v127
    %v186 = vunpack.c.l.b16 %v128
    %v187 = vunpack.c.h.b16 %v128
    %v188 = vunpack.c.l.b16 %v129
    %v189 = vunpack.c.h.b16 %v129
    %v190 = vpack.c.b16 %v160, %v158
    %v191 = vpack.c.b16 %v161, %v159
    %v192 = vpack.c.b16 %v164, %v162
    %v193 = vpack.c.b16 %v165, %v163
    %v194 = vpack.c.b16 %v168, %v166
    %v195 = vpack.c.b16 %v169, %v167
    %v196 = vpack.c.b16 %v172, %v170
    %v197 = vpack.c.b16 %v173, %v171
    %v198 = vpack.c.b16 %v176, %v174
    %v199 = vpack.c.b16 %v177, %v175
    %v200 = vpack.c.b16 %v180, %v178
    %v201 = vpack.c.b16 %v181, %v179
    %v202 = vpack.c.b16 %v184, %v182
    %v203 = vpack.c.b16 %v185, %v183
    %v204 = vpack.c.b16 %v188, %v186
    %v205 = vpack.c.b16 %v189, %v187
    %222 = vmatprep.subr.bf16.mxu0 %v191
    %223 = vmatpush1.bf16.msra.mxu0 %v190
    %224 = vmatprep.subr.bf16.mxu0 %v193
    %225 = vmatpush1.bf16.msra.mxu0 %v192
    %226 = vmatprep.subr.bf16.mxu0 %v195
    %227 = vmatpush1.bf16.msra.mxu0 %v194
    %228 = vmatprep.subr.bf16.mxu0 %v197
    %229 = vmatpush1.bf16.msra.mxu0 %v196
    %230 = vmatprep.subr.bf16.mxu0 %v199
    %231 = vmatpush1.bf16.msra.mxu0 %v198
    %232 = vmatprep.subr.bf16.mxu0 %v201
    %233 = vmatpush1.bf16.msra.mxu0 %v200
    %234 = vmatprep.subr.bf16.mxu0 %v203
    %235 = vmatpush1.bf16.msra.mxu0 %v202
    %236 = vmatprep.subr.bf16.mxu0 %v205
    %237 = vmatpush1.bf16.msra.mxu0 %v204
    %238 = vmatprep.subr.bf16.mxu0 0
    %239 = vmatpush1.bf16.msra.mxu0 0
    %240 = vmatprep.subr.bf16.mxu0 0
    %241 = vmatpush1.bf16.msra.mxu0 0
    %242 = vmatprep.subr.bf16.mxu0 0
    %243 = vmatpush1.bf16.msra.mxu0 0
    %244 = vmatprep.subr.bf16.mxu0 0
    %245 = vmatpush1.bf16.msra.mxu0 0
    %246 = vmatprep.subr.bf16.mxu0 0
    %247 = vmatpush1.bf16.msra.mxu0 0
    %248 = vmatprep.subr.bf16.mxu0 0
    %249 = vmatpush1.bf16.msra.mxu0 0
    %250 = vmatprep.subr.bf16.mxu0 0
    %251 = vmatpush1.bf16.msra.mxu0 0
    %252 = vmatprep.subr.bf16.mxu0 0
    %253 = vmatpush1.bf16.msra.mxu0 0
    %254 = vmatprep.mubr.bf16.mxu0 0
    %255 = vmatmul.mubr.bf16.gmra.mrb[0].mxu0 %v113
    %v256 = vpop.f32.mrb[0].mxu0
    %v257 = vadd.f32 %v135, %v256
    %v258 = vpop.f32.mrb[0].mxu0
    %v259 = vadd.f32 %v139, %v258
    %v260 = vpop.f32.mrb[0].mxu0
    %v261 = vadd.f32 %v135, %v260
    %v262 = vpop.f32.mrb[0].mxu0
    %v263 = vadd.f32 %v139, %v262
    %264 = vdwg.mxu0
    %v265 = vmax.f32 %v257, 0.0
    %v266 = vmax.f32 %v259, 0.0
    %v267 = vmax.f32 %v261, 0.0
    %v268 = vmax.f32 %v263, 0.0
    %v269 = vpack.c.bf16 %v267, %v265
    %v270 = vpack.c.bf16 %v268, %v266
    %v271 = vld [vmem:[#allocation8] sm:$0xff]
    %v272 = vld [vmem:[#allocation8 + $0x8] sm:$0xff]
    %v273 = vld [vmem:[#allocation8 + $0x10] sm:$0xff]
    %v274 = vld [vmem:[#allocation8 + $0x18] sm:$0xff]
    %v275 = vld [vmem:[#allocation8 + $0x20] sm:$0xff]
    %v276 = vld [vmem:[#allocation8 + $0x28] sm:$0xff]
    %v277 = vld [vmem:[#allocation8 + $0x30] sm:$0xff]
    %v278 = vld [vmem:[#allocation8 + $0x38] sm:$0xff]
    %v279 = vld [vmem:[#allocation8 + $0x40] sm:$0xff]
    %v280 = vld [vmem:[#allocation8 + $0x48] sm:$0xff]
    %v281 = vld [vmem:[#allocation8 + $0x50] sm:$0xff]
    %v282 = vld [vmem:[#allocation8 + $0x58] sm:$0xff]
    %v283 = vld [vmem:[#allocation8 + $0x60] sm:$0xff]
    %v284 = vld [vmem:[#allocation8 + $0x68] sm:$0xff]
    %v285 = vld [vmem:[#allocation8 + $0x70] sm:$0xff]
    %v286 = vld [vmem:[#allocation8 + $0x78] sm:$0xff]
    %v287 = vld [vmem:[#allocation8 + $0x80] sm:$0xff]
    %v288 = vld [vmem:[#allocation8 + $0x88] sm:$0xff]
    %v289 = vld [vmem:[#allocation8 + $0x90] sm:$0xff]
    %v290 = vld [vmem:[#allocation8 + $0x98] sm:$0xff]
    %v291 = vld [vmem:[#allocation8 + $0xa0] sm:$0xff]
    %v292 = vld [vmem:[#allocation8 + $0xa8] sm:$0xff]
    %v293 = vld [vmem:[#allocation8 + $0xb0] sm:$0xff]
    %v294 = vld [vmem:[#allocation8 + $0xb8] sm:$0xff]
    %v295 = vld [vmem:[#allocation8 + $0xc0] sm:$0xff]
    %v296 = vld [vmem:[#allocation8 + $0xc8] sm:$0xff]
    %v297 = vld [vmem:[#allocation8 + $0xd0] sm:$0xff]
    %v298 = vld [vmem:[#allocation8 + $0xd8] sm:$0xff]
    %v299 = vld [vmem:[#allocation8 + $0xe0] sm:$0xff]
    %v300 = vld [vmem:[#allocation8 + $0xe8] sm:$0xff]
    %v301 = vld [vmem:[#allocation8 + $0xf0] sm:$0xff]
    %v302 = vld [vmem:[#allocation8 + $0xf8] sm:$0xff]
    %v303 = vld [vmem:[%s4] sm:$0x3]
    %v305 = vlaneseq
    %v306 = vshrl.u32 %v305, 7
    %v307 = vsub.s32 0, %v306
    %v308 = vrot.slane %v303, %v307
    %v309 = vlaneseq
    %v310 = vshrl.u32 %v309, 7
    %v311 = vsub.s32 1, %v310
    %v312 = vrot.slane %v303, %v311
    %v347 = vunpack.c.l.b16 %v271
    %v348 = vunpack.c.h.b16 %v271
    %v349 = vunpack.c.l.b16 %v272
    %v350 = vunpack.c.h.b16 %v272
    %v351 = vunpack.c.l.b16 %v273
    %v352 = vunpack.c.h.b16 %v273
    %v353 = vunpack.c.l.b16 %v274
    %v354 = vunpack.c.h.b16 %v274
    %v355 = vunpack.c.l.b16 %v275
    %v356 = vunpack.c.h.b16 %v275
    %v357 = vunpack.c.l.b16 %v276
    %v358 = vunpack.c.h.b16 %v276
    %v359 = vunpack.c.l.b16 %v277
    %v360 = vunpack.c.h.b16 %v277
    %v361 = vunpack.c.l.b16 %v278
    %v362 = vunpack.c.h.b16 %v278
    %v363 = vunpack.c.l.b16 %v279
    %v364 = vunpack.c.h.b16 %v279
    %v365 = vunpack.c.l.b16 %v280
    %v366 = vunpack.c.h.b16 %v280
    %v367 = vunpack.c.l.b16 %v281
    %v368 = vunpack.c.h.b16 %v281
    %v369 = vunpack.c.l.b16 %v282
    %v370 = vunpack.c.h.b16 %v282
    %v371 = vunpack.c.l.b16 %v283
    %v372 = vunpack.c.h.b16 %v283
    %v373 = vunpack.c.l.b16 %v284
    %v374 = vunpack.c.h.b16 %v284
    %v375 = vunpack.c.l.b16 %v285
    %v376 = vunpack.c.h.b16 %v285
    %v377 = vunpack.c.l.b16 %v286
    %v378 = vunpack.c.h.b16 %v286
    %v379 = vunpack.c.l.b16 %v287
    %v380 = vunpack.c.h.b16 %v287
    %v381 = vunpack.c.l.b16 %v288
    %v382 = vunpack.c.h.b16 %v288
    %v383 = vunpack.c.l.b16 %v289
    %v384 = vunpack.c.h.b16 %v289
    %v385 = vunpack.c.l.b16 %v290
    %v386 = vunpack.c.h.b16 %v290
    %v387 = vunpack.c.l.b16 %v291
    %v388 = vunpack.c.h.b16 %v291
    %v389 = vunpack.c.l.b16 %v292
    %v390 = vunpack.c.h.b16 %v292
    %v391 = vunpack.c.l.b16 %v293
    %v392 = vunpack.c.h.b16 %v293
    %v393 = vunpack.c.l.b16 %v294
    %v394 = vunpack.c.h.b16 %v294
    %v395 = vunpack.c.l.b16 %v295
    %v396 = vunpack.c.h.b16 %v295
    %v397 = vunpack.c.l.b16 %v296
    %v398 = vunpack.c.h.b16 %v296
    %v399 = vunpack.c.l.b16 %v297
    %v400 = vunpack.c.h.b16 %v297
    %v401 = vunpack.c.l.b16 %v298
    %v402 = vunpack.c.h.b16 %v298
    %v403 = vunpack.c.l.b16 %v299
    %v404 = vunpack.c.h.b16 %v299
    %v405 = vunpack.c.l.b16 %v300
    %v406 = vunpack.c.h.b16 %v300
    %v407 = vunpack.c.l.b16 %v301
    %v408 = vunpack.c.h.b16 %v301
    %v409 = vunpack.c.l.b16 %v302
    %v410 = vunpack.c.h.b16 %v302
    %v411 = vpack.c.b16 %v349, %v347
    %v412 = vpack.c.b16 %v350, %v348
    %v413 = vpack.c.b16 %v353, %v351
    %v414 = vpack.c.b16 %v354, %v352
    %v415 = vpack.c.b16 %v357, %v355
    %v416 = vpack.c.b16 %v358, %v356
    %v417 = vpack.c.b16 %v361, %v359
    %v418 = vpack.c.b16 %v362, %v360
    %v419 = vpack.c.b16 %v365, %v363
    %v420 = vpack.c.b16 %v366, %v364
    %v421 = vpack.c.b16 %v369, %v367
    %v422 = vpack.c.b16 %v370, %v368
    %v423 = vpack.c.b16 %v373, %v371
    %v424 = vpack.c.b16 %v374, %v372
    %v425 = vpack.c.b16 %v377, %v375
    %v426 = vpack.c.b16 %v378, %v376
    %v427 = vpack.c.b16 %v381, %v379
    %v428 = vpack.c.b16 %v382, %v380
    %v429 = vpack.c.b16 %v385, %v383
    %v430 = vpack.c.b16 %v386, %v384
    %v431 = vpack.c.b16 %v389, %v387
    %v432 = vpack.c.b16 %v390, %v388
    %v433 = vpack.c.b16 %v393, %v391
    %v434 = vpack.c.b16 %v394, %v392
    %v435 = vpack.c.b16 %v397, %v395
    %v436 = vpack.c.b16 %v398, %v396
    %v437 = vpack.c.b16 %v401, %v399
    %v438 = vpack.c.b16 %v402, %v400
    %v439 = vpack.c.b16 %v405, %v403
    %v440 = vpack.c.b16 %v406, %v404
    %v441 = vpack.c.b16 %v409, %v407
    %v442 = vpack.c.b16 %v410, %v408
    %475 = vmatprep.subr.bf16.mxu0 %v412
    %476 = vmatpush1.bf16.msra.mxu0 %v411
    %477 = vmatprep.subr.bf16.mxu0 %v414
    %478 = vmatpush1.bf16.msra.mxu0 %v413
    %479 = vmatprep.subr.bf16.mxu0 %v416
    %480 = vmatpush1.bf16.msra.mxu0 %v415
    %481 = vmatprep.subr.bf16.mxu0 %v418
    %482 = vmatpush1.bf16.msra.mxu0 %v417
    %483 = vmatprep.subr.bf16.mxu0 %v420
    %484 = vmatpush1.bf16.msra.mxu0 %v419
    %485 = vmatprep.subr.bf16.mxu0 %v422
    %486 = vmatpush1.bf16.msra.mxu0 %v421
    %487 = vmatprep.subr.bf16.mxu0 %v424
    %488 = vmatpush1.bf16.msra.mxu0 %v423
    %489 = vmatprep.subr.bf16.mxu0 %v426
    %490 = vmatpush1.bf16.msra.mxu0 %v425
    %491 = vmatprep.subr.bf16.mxu0 %v428
    %492 = vmatpush1.bf16.msra.mxu0 %v427
    %493 = vmatprep.subr.bf16.mxu0 %v430
    %494 = vmatpush1.bf16.msra.mxu0 %v429
    %495 = vmatprep.subr.bf16.mxu0 %v432
    %496 = vmatpush1.bf16.msra.mxu0 %v431
    %497 = vmatprep.subr.bf16.mxu0 %v434
    %498 = vmatpush1.bf16.msra.mxu0 %v433
    %499 = vmatprep.subr.bf16.mxu0 %v436
    %500 = vmatpush1.bf16.msra.mxu0 %v435
    %501 = vmatprep.subr.bf16.mxu0 %v438
    %502 = vmatpush1.bf16.msra.mxu0 %v437
    %503 = vmatprep.subr.bf16.mxu0 %v440
    %504 = vmatpush1.bf16.msra.mxu0 %v439
    %505 = vmatprep.subr.bf16.mxu0 %v442
    %506 = vmatpush1.bf16.msra.mxu0 %v441
    %507 = vmatprep.mubr.bf16.mxu0 %v270
    %508 = vmatmul.mubr.bf16.gmra.mrb[0].mxu0 %v269
    %v509 = vpop.f32.mrb[0].mxu0
    %v510 = vadd.f32 %v308, %v509
    %v511 = vpop.f32.mrb[0].mxu0
    %v512 = vadd.f32 %v312, %v511
    %v513 = vpop.f32.mrb[0].mxu0
    %v514 = vadd.f32 %v308, %v513
    %v515 = vpop.f32.mrb[0].mxu0
    %v516 = vadd.f32 %v312, %v515
    %517 = vdwg.mxu0
    %v518 = vmax.f32 %v510, 0.0
    %v519 = vmax.f32 %v512, 0.0
    %v520 = vmax.f32 %v514, 0.0
    %v521 = vmax.f32 %v516, 0.0
    %v522 = vpack.c.bf16 %v520, %v518
    %v523 = vpack.c.bf16 %v521, %v519
    %v524 = vld [vmem:[#allocation9] sm:$0xff]
    %v525 = vld [vmem:[#allocation9 + $0x8] sm:$0xff]
    %v526 = vld [vmem:[#allocation9 + $0x10] sm:$0xff]
    %v527 = vld [vmem:[#allocation9 + $0x18] sm:$0xff]
    %v528 = vld [vmem:[#allocation9 + $0x20] sm:$0xff]
    %v529 = vld [vmem:[#allocation9 + $0x28] sm:$0xff]
    %v530 = vld [vmem:[#allocation9 + $0x30] sm:$0xff]
    %v531 = vld [vmem:[#allocation9 + $0x38] sm:$0xff]
    %v532 = vld [vmem:[#allocation9 + $0x40] sm:$0xff]
    %v533 = vld [vmem:[#allocation9 + $0x48] sm:$0xff]
    %v534 = vld [vmem:[#allocation9 + $0x50] sm:$0xff]
    %v535 = vld [vmem:[#allocation9 + $0x58] sm:$0xff]
    %v536 = vld [vmem:[#allocation9 + $0x60] sm:$0xff]
    %v537 = vld [vmem:[#allocation9 + $0x68] sm:$0xff]
    %v538 = vld [vmem:[#allocation9 + $0x70] sm:$0xff]
    %v539 = vld [vmem:[#allocation9 + $0x78] sm:$0xff]
    %v540 = vld [vmem:[#allocation9 + $0x80] sm:$0xff]
    %v541 = vld [vmem:[#allocation9 + $0x88] sm:$0xff]
    %v542 = vld [vmem:[#allocation9 + $0x90] sm:$0xff]
    %v543 = vld [vmem:[#allocation9 + $0x98] sm:$0xff]
    %v544 = vld [vmem:[#allocation9 + $0xa0] sm:$0xff]
    %v545 = vld [vmem:[#allocation9 + $0xa8] sm:$0xff]
    %v546 = vld [vmem:[#allocation9 + $0xb0] sm:$0xff]
    %v547 = vld [vmem:[#allocation9 + $0xb8] sm:$0xff]
    %v548 = vld [vmem:[#allocation9 + $0xc0] sm:$0xff]
    %v549 = vld [vmem:[#allocation9 + $0xc8] sm:$0xff]
    %v550 = vld [vmem:[#allocation9 + $0xd0] sm:$0xff]
    %v551 = vld [vmem:[#allocation9 + $0xd8] sm:$0xff]
    %v552 = vld [vmem:[#allocation9 + $0xe0] sm:$0xff]
    %v553 = vld [vmem:[#allocation9 + $0xe8] sm:$0xff]
    %v554 = vld [vmem:[#allocation9 + $0xf0] sm:$0xff]
    %v555 = vld [vmem:[#allocation9 + $0xf8] sm:$0xff]
    %v556 = vld [vmem:[%s6] sm:$0x3]
    %v558 = vlaneseq
    %v559 = vshrl.u32 %v558, 7
    %v560 = vsub.s32 0, %v559
    %v561 = vrot.slane %v556, %v560
    %v562 = vlaneseq
    %v563 = vshrl.u32 %v562, 7
    %v564 = vsub.s32 1, %v563
    %v565 = vrot.slane %v556, %v564
    %v600 = vunpack.c.l.b16 %v524
    %v601 = vunpack.c.h.b16 %v524
    %v602 = vunpack.c.l.b16 %v525
    %v603 = vunpack.c.h.b16 %v525
    %v604 = vunpack.c.l.b16 %v526
    %v605 = vunpack.c.h.b16 %v526
    %v606 = vunpack.c.l.b16 %v527
    %v607 = vunpack.c.h.b16 %v527
    %v608 = vunpack.c.l.b16 %v528
    %v609 = vunpack.c.h.b16 %v528
    %v610 = vunpack.c.l.b16 %v529
    %v611 = vunpack.c.h.b16 %v529
    %v612 = vunpack.c.l.b16 %v530
    %v613 = vunpack.c.h.b16 %v530
    %v614 = vunpack.c.l.b16 %v531
    %v615 = vunpack.c.h.b16 %v531
    %v616 = vunpack.c.l.b16 %v532
    %v617 = vunpack.c.h.b16 %v532
    %v618 = vunpack.c.l.b16 %v533
    %v619 = vunpack.c.h.b16 %v533
    %v620 = vunpack.c.l.b16 %v534
    %v621 = vunpack.c.h.b16 %v534
    %v622 = vunpack.c.l.b16 %v535
    %v623 = vunpack.c.h.b16 %v535
    %v624 = vunpack.c.l.b16 %v536
    %v625 = vunpack.c.h.b16 %v536
    %v626 = vunpack.c.l.b16 %v537
    %v627 = vunpack.c.h.b16 %v537
    %v628 = vunpack.c.l.b16 %v538
    %v629 = vunpack.c.h.b16 %v538
    %v630 = vunpack.c.l.b16 %v539
    %v631 = vunpack.c.h.b16 %v539
    %v632 = vunpack.c.l.b16 %v540
    %v633 = vunpack.c.h.b16 %v540
    %v634 = vunpack.c.l.b16 %v541
    %v635 = vunpack.c.h.b16 %v541
    %v636 = vunpack.c.l.b16 %v542
    %v637 = vunpack.c.h.b16 %v542
    %v638 = vunpack.c.l.b16 %v543
    %v639 = vunpack.c.h.b16 %v543
    %v640 = vunpack.c.l.b16 %v544
    %v641 = vunpack.c.h.b16 %v544
    %v642 = vunpack.c.l.b16 %v545
    %v643 = vunpack.c.h.b16 %v545
    %v644 = vunpack.c.l.b16 %v546
    %v645 = vunpack.c.h.b16 %v546
    %v646 = vunpack.c.l.b16 %v547
    %v647 = vunpack.c.h.b16 %v547
    %v648 = vunpack.c.l.b16 %v548
    %v649 = vunpack.c.h.b16 %v548
    %v650 = vunpack.c.l.b16 %v549
    %v651 = vunpack.c.h.b16 %v549
    %v652 = vunpack.c.l.b16 %v550
    %v653 = vunpack.c.h.b16 %v550
    %v654 = vunpack.c.l.b16 %v551
    %v655 = vunpack.c.h.b16 %v551
    %v656 = vunpack.c.l.b16 %v552
    %v657 = vunpack.c.h.b16 %v552
    %v658 = vunpack.c.l.b16 %v553
    %v659 = vunpack.c.h.b16 %v553
    %v660 = vunpack.c.l.b16 %v554
    %v661 = vunpack.c.h.b16 %v554
    %v662 = vunpack.c.l.b16 %v555
    %v663 = vunpack.c.h.b16 %v555
    %v664 = vpack.c.b16 %v602, %v600
    %v665 = vpack.c.b16 %v603, %v601
    %v666 = vpack.c.b16 %v606, %v604
    %v667 = vpack.c.b16 %v607, %v605
    %v668 = vpack.c.b16 %v610, %v608
    %v669 = vpack.c.b16 %v611, %v609
    %v670 = vpack.c.b16 %v614, %v612
    %v671 = vpack.c.b16 %v615, %v613
    %v672 = vpack.c.b16 %v618, %v616
    %v673 = vpack.c.b16 %v619, %v617
    %v674 = vpack.c.b16 %v622, %v620
    %v675 = vpack.c.b16 %v623, %v621
    %v676 = vpack.c.b16 %v626, %v624
    %v677 = vpack.c.b16 %v627, %v625
    %v678 = vpack.c.b16 %v630, %v628
    %v679 = vpack.c.b16 %v631, %v629
    %v680 = vpack.c.b16 %v634, %v632
    %v681 = vpack.c.b16 %v635, %v633
    %v682 = vpack.c.b16 %v638, %v636
    %v683 = vpack.c.b16 %v639, %v637
    %v684 = vpack.c.b16 %v642, %v640
    %v685 = vpack.c.b16 %v643, %v641
    %v686 = vpack.c.b16 %v646, %v644
    %v687 = vpack.c.b16 %v647, %v645
    %v688 = vpack.c.b16 %v650, %v648
    %v689 = vpack.c.b16 %v651, %v649
    %v690 = vpack.c.b16 %v654, %v652
    %v691 = vpack.c.b16 %v655, %v653
    %v692 = vpack.c.b16 %v658, %v656
    %v693 = vpack.c.b16 %v659, %v657
    %v694 = vpack.c.b16 %v662, %v660
    %v695 = vpack.c.b16 %v663, %v661
    %728 = vmatprep.subr.bf16.mxu0 %v665
    %729 = vmatpush1.bf16.msra.mxu0 %v664
    %730 = vmatprep.subr.bf16.mxu0 %v667
    %731 = vmatpush1.bf16.msra.mxu0 %v666
    %732 = vmatprep.subr.bf16.mxu0 %v669
    %733 = vmatpush1.bf16.msra.mxu0 %v668
    %734 = vmatprep.subr.bf16.mxu0 %v671
    %735 = vmatpush1.bf16.msra.mxu0 %v670
    %736 = vmatprep.subr.bf16.mxu0 %v673
    %737 = vmatpush1.bf16.msra.mxu0 %v672
    %738 = vmatprep.subr.bf16.mxu0 %v675
    %739 = vmatpush1.bf16.msra.mxu0 %v674
    %740 = vmatprep.subr.bf16.mxu0 %v677
    %741 = vmatpush1.bf16.msra.mxu0 %v676
    %742 = vmatprep.subr.bf16.mxu0 %v679
    %743 = vmatpush1.bf16.msra.mxu0 %v678
    %744 = vmatprep.subr.bf16.mxu0 %v681
    %745 = vmatpush1.bf16.msra.mxu0 %v680
    %746 = vmatprep.subr.bf16.mxu0 %v683
    %747 = vmatpush1.bf16.msra.mxu0 %v682
    %748 = vmatprep.subr.bf16.mxu0 %v685
    %749 = vmatpush1.bf16.msra.mxu0 %v684
    %750 = vmatprep.subr.bf16.mxu0 %v687
    %751 = vmatpush1.bf16.msra.mxu0 %v686
    %752 = vmatprep.subr.bf16.mxu0 %v689
    %753 = vmatpush1.bf16.msra.mxu0 %v688
    %754 = vmatprep.subr.bf16.mxu0 %v691
    %755 = vmatpush1.bf16.msra.mxu0 %v690
    %756 = vmatprep.subr.bf16.mxu0 %v693
    %757 = vmatpush1.bf16.msra.mxu0 %v692
    %758 = vmatprep.subr.bf16.mxu0 %v695
    %759 = vmatpush1.bf16.msra.mxu0 %v694
    %760 = vmatprep.mubr.bf16.mxu0 %v523
    %761 = vmatmul.mubr.bf16.gmra.mrb[0].mxu0 %v522
    %v762 = vpop.f32.mrb[0].mxu0
    %v763 = vadd.f32 %v561, %v762
    %v764 = vpop.f32.mrb[0].mxu0
    %v765 = vadd.f32 %v565, %v764
    %v766 = vpop.f32.mrb[0].mxu0
    %v767 = vadd.f32 %v561, %v766
    %v768 = vpop.f32.mrb[0].mxu0
    %v769 = vadd.f32 %v565, %v768
    %770 = vdwg.mxu0
    %v771 = vmax.f32 %v763, 0.0
    %v772 = vmax.f32 %v765, 0.0
    %v773 = vmax.f32 %v767, 0.0
    %v774 = vmax.f32 %v769, 0.0
    %v775 = vpack.c.bf16 %v773, %v771
    %v776 = vpack.c.bf16 %v774, %v772
    %v777 = vld [vmem:[#allocation11] sm:$0xf]
    %v778 = vld [vmem:[#allocation11 + $0x4] sm:$0xf]
    %v779 = vld [vmem:[#allocation11 + $0x8] sm:$0xf]
    %v780 = vld [vmem:[#allocation11 + $0xc] sm:$0xf]
    %v781 = vld [vmem:[#allocation11 + $0x10] sm:$0xf]
    %v782 = vld [vmem:[#allocation11 + $0x14] sm:$0xf]
    %v783 = vld [vmem:[#allocation11 + $0x18] sm:$0xf]
    %v784 = vld [vmem:[#allocation11 + $0x1c] sm:$0xf]
    %v785 = vld [vmem:[#allocation11 + $0x20] sm:$0xf]
    %v786 = vld [vmem:[#allocation11 + $0x24] sm:$0xf]
    %v787 = vld [vmem:[#allocation11 + $0x28] sm:$0xf]
    %v788 = vld [vmem:[#allocation11 + $0x2c] sm:$0xf]
    %v789 = vld [vmem:[#allocation11 + $0x30] sm:$0xf]
    %v790 = vld [vmem:[#allocation11 + $0x34] sm:$0xf]
    %v791 = vld [vmem:[#allocation11 + $0x38] sm:$0xf]
    %v792 = vld [vmem:[#allocation11 + $0x3c] sm:$0xf]
    %v793 = vld [vmem:[#allocation11 + $0x40] sm:$0xf]
    %v794 = vld [vmem:[#allocation11 + $0x44] sm:$0xf]
    %v795 = vld [vmem:[#allocation11 + $0x48] sm:$0xf]
    %v796 = vld [vmem:[#allocation11 + $0x4c] sm:$0xf]
    %v797 = vld [vmem:[#allocation11 + $0x50] sm:$0xf]
    %v798 = vld [vmem:[#allocation11 + $0x54] sm:$0xf]
    %v799 = vld [vmem:[#allocation11 + $0x58] sm:$0xf]
    %v800 = vld [vmem:[#allocation11 + $0x5c] sm:$0xf]
    %v801 = vld [vmem:[#allocation11 + $0x60] sm:$0xf]
    %v802 = vld [vmem:[#allocation11 + $0x64] sm:$0xf]
    %v803 = vld [vmem:[#allocation11 + $0x68] sm:$0xf]
    %v804 = vld [vmem:[#allocation11 + $0x6c] sm:$0xf]
    %v805 = vld [vmem:[#allocation11 + $0x70] sm:$0xf]
    %v806 = vld [vmem:[#allocation11 + $0x74] sm:$0xf]
    %v807 = vld [vmem:[#allocation11 + $0x78] sm:$0xf]
    %v808 = vld [vmem:[#allocation11 + $0x7c] sm:$0xf]
    %v809 = vld [vmem:[%s8] sm:$0x1]
    %v811 = vlaneseq
    %v812 = vshrl.u32 %v811, 7
    %v813 = vsub.s32 0, %v812
    %v814 = vrot.slane %v809, %v813
    %v848 = vunpack.c.l.b16 %v777
    %v849 = vunpack.c.l.b16 %v778
    %v850 = vunpack.c.l.b16 %v779
    %v851 = vunpack.c.l.b16 %v780
    %v852 = vunpack.c.l.b16 %v781
    %v853 = vunpack.c.l.b16 %v782
    %v854 = vunpack.c.l.b16 %v783
    %v855 = vunpack.c.l.b16 %v784
    %v856 = vunpack.c.l.b16 %v785
    %v857 = vunpack.c.l.b16 %v786
    %v858 = vunpack.c.l.b16 %v787
    %v859 = vunpack.c.l.b16 %v788
    %v860 = vunpack.c.l.b16 %v789
    %v861 = vunpack.c.l.b16 %v790
    %v862 = vunpack.c.l.b16 %v791
    %v863 = vunpack.c.l.b16 %v792
    %v864 = vunpack.c.l.b16 %v793
    %v865 = vunpack.c.l.b16 %v794
    %v866 = vunpack.c.l.b16 %v795
    %v867 = vunpack.c.l.b16 %v796
    %v868 = vunpack.c.l.b16 %v797
    %v869 = vunpack.c.l.b16 %v798
    %v870 = vunpack.c.l.b16 %v799
    %v871 = vunpack.c.l.b16 %v800
    %v872 = vunpack.c.l.b16 %v801
    %v873 = vunpack.c.l.b16 %v802
    %v874 = vunpack.c.l.b16 %v803
    %v875 = vunpack.c.l.b16 %v804
    %v876 = vunpack.c.l.b16 %v805
    %v877 = vunpack.c.l.b16 %v806
    %v878 = vunpack.c.l.b16 %v807
    %v879 = vunpack.c.l.b16 %v808
    %v880 = vpack.c.b16 %v849, %v848
    %v881 = vpack.c.b16 %v851, %v850
    %v882 = vpack.c.b16 %v853, %v852
    %v883 = vpack.c.b16 %v855, %v854
    %v884 = vpack.c.b16 %v857, %v856
    %v885 = vpack.c.b16 %v859, %v858
    %v886 = vpack.c.b16 %v861, %v860
    %v887 = vpack.c.b16 %v863, %v862
    %v888 = vpack.c.b16 %v865, %v864
    %v889 = vpack.c.b16 %v867, %v866
    %v890 = vpack.c.b16 %v869, %v868
    %v891 = vpack.c.b16 %v871, %v870
    %v892 = vpack.c.b16 %v873, %v872
    %v893 = vpack.c.b16 %v875, %v874
    %v894 = vpack.c.b16 %v877, %v876
    %v895 = vpack.c.b16 %v879, %v878
    %912 = vmatprep.subr.bf16.mxu0 0
    %913 = vmatpush1.bf16.msra.mxu0 %v880
    %914 = vmatprep.subr.bf16.mxu0 0
    %915 = vmatpush1.bf16.msra.mxu0 %v881
    %916 = vmatprep.subr.bf16.mxu0 0
    %917 = vmatpush1.bf16.msra.mxu0 %v882
    %918 = vmatprep.subr.bf16.mxu0 0
    %919 = vmatpush1.bf16.msra.mxu0 %v883
    %920 = vmatprep.subr.bf16.mxu0 0
    %921 = vmatpush1.bf16.msra.mxu0 %v884
    %922 = vmatprep.subr.bf16.mxu0 0
    %923 = vmatpush1.bf16.msra.mxu0 %v885
    %924 = vmatprep.subr.bf16.mxu0 0
    %925 = vmatpush1.bf16.msra.mxu0 %v886
    %926 = vmatprep.subr.bf16.mxu0 0
    %927 = vmatpush1.bf16.msra.mxu0 %v887
    %928 = vmatprep.subr.bf16.mxu0 0
    %929 = vmatpush1.bf16.msra.mxu0 %v888
    %930 = vmatprep.subr.bf16.mxu0 0
    %931 = vmatpush1.bf16.msra.mxu0 %v889
    %932 = vmatprep.subr.bf16.mxu0 0
    %933 = vmatpush1.bf16.msra.mxu0 %v890
    %934 = vmatprep.subr.bf16.mxu0 0
    %935 = vmatpush1.bf16.msra.mxu0 %v891
    %936 = vmatprep.subr.bf16.mxu0 0
    %937 = vmatpush1.bf16.msra.mxu0 %v892
    %938 = vmatprep.subr.bf16.mxu0 0
    %939 = vmatpush1.bf16.msra.mxu0 %v893
    %940 = vmatprep.subr.bf16.mxu0 0
    %941 = vmatpush1.bf16.msra.mxu0 %v894
    %942 = vmatprep.subr.bf16.mxu0 0
    %943 = vmatpush1.bf16.msra.mxu0 %v895
    %944 = vmatprep.mubr.bf16.mxu0 %v776
    %945 = vmatmul.mubr.bf16.gmra.mrb[0].mxu0 %v775
    %v946 = vpop.f32.mrb[0].mxu0
    %v947 = vadd.f32 %v814, %v946
    %v948 = vpop.f32.mrb[0].mxu0
    %v949 = vpop.f32.mrb[0].mxu0
    %v950 = vadd.f32 %v814, %v949
    %v951 = vpop.f32.mrb[0].mxu0
    %952 = vdwg.mxu0
    %v953 = vpack.c.bf16 %v950, %v947
    %v955 = vunpack.c.l.b16 %v953
    %v956 = vunpack.c.h.b16 %v953
    %v957 = vpack.c.b16 %v955, %v955
    %v958 = vpack.c.b16 %v956, %v956
    %961 = vst [vmem:[#allocation12] sm:$0xf] %v957
    %962 = vst [vmem:[#allocation12 + $0x4] sm:$0xf] %v958
    // Predicated region
    $region58: #{tpu_custom_call.1} parent=1 // pred_check
      _
    $region59: #{tpu_custom_call.1} parent=1 // pred_check_branch
      %964 = sbr.rel (0) target = $region61
    $region60: #{tpu_custom_call.1} parent=1 // pred_region
      %s966 = ssub.s32 128, 128
      %967 = vsyncadd [#allocation5], %s966
      %s968 = sshll.u32 [#allocation12], 4
      %s969 = int_to_ptr.vmem [resolvable:$true] %s968
      %974 = dma.vmem_to_hbm [thread:$0]  %s969, 128, %s9, [#allocation5], 64, 64, 4
    $region61: #{tpu_custom_call.1} parent=1 // pred_fallthru
      _
    // Predicated region
    $region62: #{tpu_custom_call.1} parent=1 // pred_check
      _
    $region63: #{tpu_custom_call.1} parent=1 // pred_check_branch
      %976 = sbr.rel (0) target = $region65
    $region64: #{tpu_custom_call.1} parent=1 // pred_region
      %977 = dma.done [#allocation5], 128
    $region65: #{tpu_custom_call.1} parent=1 // pred_fallthru
      _
    %978 = vsyncpa [#allocation4], 1
    %979 = vsyncpa [#allocation7], 1
    %980 = vsyncpa [#allocation10], 1
    %981 = vsyncpa [#allocation5], 1

</llo_original>
